<compile_context>
chip_gen: v7x
topology: tpu7x:2x2x1
jax: 0.10.0
libtpu: 0.0.40
codegen_flags: <defaults>
</compile_context>

<pallas_src>
import functools

import jax
import jax.numpy as jnp
from jax.experimental import pallas as pl
from jax.experimental.pallas import tpu as pltpu


def _round_up(x, m):
    return ((x + m - 1) // m) * m


def _pick_tile(total, base, cap):
    """Largest multiple of `base` that divides `total` and is <= cap."""
    best = base
    t = base
    limit = min(cap, total)
    while t <= limit:
        if total % t == 0:
            best = t
        t += base
    return best


def _vmem_capacity_bytes():
    try:
        return int(pltpu.get_tpu_info().vmem_capacity_bytes)
    except Exception:
        return 64 * 1024 * 1024  # conservative default (v7x per-TensorCore VMEM)


# --------------------------------------------------------------------------- #
# Fused path: all propagation hops in a single kernel, adjacency VMEM-resident #
# --------------------------------------------------------------------------- #
def _hyper_fused_kernel(a_ref, h_ref, o_ref, *, steps, out_scale, mm_dtype):
    h0 = h_ref[...]
    cur = h0.astype(mm_dtype)              # propagated state (MXU operand dtype)
    acc = h0.astype(jnp.float32)           # running sum in f32
    # `steps` is a small static int -> unrolled; adjacency stays VMEM-resident
    # across all hops (single copy: no grid => no double buffering).
    for _ in range(steps):
        nxt = jnp.dot(a_ref[...], cur, preferred_element_type=jnp.float32)
        acc = acc + nxt
        cur = nxt.astype(mm_dtype)
    # Fold the final /(steps+1) into the single lane-dense output store.
    o_ref[...] = (acc * out_scale).astype(o_ref.dtype)


def _hyper_fused(a, h, *, steps, out_scale, mm_dtype, out_dtype, vmem_limit):
    Np, _ = a.shape
    _, Dp = h.shape
    kernel = functools.partial(_hyper_fused_kernel, steps=steps,
                               out_scale=out_scale, mm_dtype=mm_dtype)
    return pl.pallas_call(
        kernel,
        out_shape=jax.ShapeDtypeStruct((Np, Dp), out_dtype),
        # Whole-array VMEM placement, single kernel invocation (grid = ()).
        in_specs=[pl.BlockSpec(memory_space=pltpu.MemorySpace.VMEM),   # adjacency
                  pl.BlockSpec(memory_space=pltpu.MemorySpace.VMEM)],  # hidden
        out_specs=pl.BlockSpec(memory_space=pltpu.MemorySpace.VMEM),
        compiler_params=pltpu.CompilerParams(vmem_limit_bytes=vmem_limit),
    )(a, h)


# --------------------------------------------------------------------------- #
# Streaming fallback: one tiled pallas_call per hop (for graphs > VMEM budget) #
# --------------------------------------------------------------------------- #
def _hyper_step_kernel(a_ref, h_ref, prev_ref, cur_out_ref, sum_out_ref, acc_ref, *,
                       out_scale):
    k = pl.program_id(2)

    @pl.when(k == 0)
    def _():
        acc_ref[...] = jnp.zeros_like(acc_ref)

    acc_ref[...] += jnp.dot(a_ref[...], h_ref[...],
                            preferred_element_type=jnp.float32)

    @pl.when(k == pl.num_programs(2) - 1)
    def _():
        cur_out_ref[...] = acc_ref[...].astype(cur_out_ref.dtype)
        sum_out_ref[...] = ((prev_ref[...] + acc_ref[...]) * out_scale
                            ).astype(sum_out_ref.dtype)


def _hyper_step(a, cur, prev_sum, *, tm, tk, tn, out_scale, mm_dtype, vmem_limit):
    Np = a.shape[0]
    Dp = cur.shape[1]
    grid = (Np // tm, Dp // tn, Np // tk)
    kernel = functools.partial(_hyper_step_kernel, out_scale=out_scale)
    return pl.pallas_call(
        kernel,
        out_shape=(
            jax.ShapeDtypeStruct((Np, Dp), mm_dtype),     # new cur (streamed next hop)
            jax.ShapeDtypeStruct((Np, Dp), jnp.float32),  # new running sum (f32 carry)
        ),
        grid_spec=pltpu.PrefetchScalarGridSpec(
            num_scalar_prefetch=0,
            grid=grid,
            in_specs=[
                pl.BlockSpec((tm, tk), lambda i, j, k: (i, k)),  # adjacency tile
                pl.BlockSpec((tk, tn), lambda i, j, k: (k, j)),  # current hidden tile
                pl.BlockSpec((tm, tn), lambda i, j, k: (i, j)),  # running-sum tile
            ],
            out_specs=(
                pl.BlockSpec((tm, tn), lambda i, j, k: (i, j)),
                pl.BlockSpec((tm, tn), lambda i, j, k: (i, j)),
            ),
            scratch_shapes=[pltpu.VMEM((tm, tn), jnp.float32)],
        ),
        compiler_params=pltpu.CompilerParams(
            dimension_semantics=("parallel", "parallel", "arbitrary"),
            vmem_limit_bytes=vmem_limit,
        ),
        # Running sum is updated in place (each (i,j) block is read before it is
        # written, blocks are disjoint).  NOTE: `cur` must NOT be aliased to the
        # new-cur output: its blocks are re-read at reduction index k by later grid
        # steps, which would observe the overwrite.
        input_output_aliases={2: 1},
    )(a, cur, prev_sum)


# --------------------------------------------------------------------------- #
# Public wrapper                                                               #
# --------------------------------------------------------------------------- #
@functools.partial(jax.jit,
                   static_argnames=("steps", "matmul_dtype", "force_streaming"))
def hyperconv_forward(hidden, adjacency, *, steps=1, matmul_dtype=jnp.bfloat16,
                      force_streaming=False):
    """HyperConv.forward: mean of multi-hop graph propagations."""
    N, D = hidden.shape
    assert adjacency.shape == (N, N), "adjacency must be square and match hidden rows"
    out_dtype = hidden.dtype
    mm_dtype = jnp.dtype(matmul_dtype if matmul_dtype is not None else adjacency.dtype)
    out_scale = 1.0 / float(steps + 1)

    Dp = _round_up(D, 128)                     # lane-dense output slab
    vmem_cap = _vmem_capacity_bytes()
    vmem_limit = int(0.9 * vmem_cap)

    # ---- fused (adjacency-resident) path ------------------------------------
    Nf = _round_up(N, 128)
    mm_bytes = jnp.dtype(mm_dtype).itemsize
    fused_bytes = (
        Nf * Nf * mm_bytes                                        # adjacency (1 copy)
        + Nf * Dp * hidden.dtype.itemsize                         # hidden input
        + Nf * Dp * jnp.dtype(out_dtype).itemsize                 # output
        + Nf * Dp * (8 + mm_bytes + 4)                            # acc/cur/dot temps
    )
    use_fused = (not force_streaming) and (fused_bytes <= int(0.7 * vmem_cap))

    if use_fused:
        a = jnp.pad(adjacency.astype(mm_dtype), ((0, Nf - N), (0, Nf - N)))
        h = jnp.pad(hidden, ((0, Nf - N), (0, Dp - D)))
        out = _hyper_fused(a, h, steps=steps, out_scale=out_scale,
                           mm_dtype=mm_dtype, out_dtype=out_dtype,
                           vmem_limit=vmem_limit)
        return out[:N, :D]

    # ---- streaming per-hop fallback (huge N) ---------------------------------
    tm = 256
    Np = _round_up(N, tm)
    tk = _pick_tile(Np, base=256, cap=2048)
    tn = _pick_tile(Dp, base=128, cap=512)

    a = jnp.pad(adjacency.astype(mm_dtype), ((0, Np - N), (0, Np - N)))
    h = jnp.pad(hidden, ((0, Np - N), (0, Dp - D)))
    cur = h.astype(mm_dtype)        # propagated state streamed in matmul dtype
    run = h.astype(jnp.float32)     # running sum carried in f32 across hops

    for s in range(steps):
        scale = out_scale if s == steps - 1 else 1.0
        cur, run = _hyper_step(a, cur, run, tm=tm, tk=tk, tn=tn,
                               out_scale=scale, mm_dtype=mm_dtype,
                               vmem_limit=vmem_limit)
    return run[:N, :D].astype(out_dtype)


def hyperconv_reference(hidden, adjacency, *, steps=1):
    final = [hidden]
    for _ in range(steps):
        final.append(adjacency @ final[-1])
    return jnp.stack(final, axis=0).sum(0) / (steps + 1)


if __name__ == "__main__":
    key = jax.random.PRNGKey(0)
    k_h, k_a = jax.random.split(key)

    # Small deterministic inputs: N = 128 nodes, hidden_size = 32, steps = 2.
    N, D, STEPS = 128, 32, 2
    hidden = jax.random.normal(k_h, (N, D), dtype=jnp.float32)
    # Dense stand-in for the (normalized) sparse hypergraph adjacency.
    adjacency = jax.random.uniform(k_a, (N, N), dtype=jnp.float32) / N

    ref = hyperconv_reference(hidden, adjacency, steps=STEPS)

    # 1) Exact-precision fused path (f32 MXU operands): tight check.
    out_f32 = jax.block_until_ready(
        hyperconv_forward(hidden, adjacency, steps=STEPS, matmul_dtype=jnp.float32))
    assert out_f32.shape == (N, D) and out_f32.dtype == jnp.float32
    assert jnp.allclose(out_f32, ref, atol=1e-5, rtol=1e-5), "f32 fused path mismatch"

    # 2) Default fast fused path (bf16 operands, f32 accumulation): loose check.
    out_fast = jax.block_until_ready(hyperconv_forward(hidden, adjacency, steps=STEPS))
    assert out_fast.shape == (N, D) and out_fast.dtype == jnp.float32
    assert jnp.allclose(out_fast, ref, atol=5e-2, rtol=5e-2), "bf16 fused path mismatch"

    # 3) Streaming fallback path (tiled per-hop kernel used for huge graphs).
    N2 = 512
    hidden2 = jax.random.normal(k_h, (N2, D), dtype=jnp.float32)
    adjacency2 = jax.random.uniform(k_a, (N2, N2), dtype=jnp.float32) / N2
    ref2 = hyperconv_reference(hidden2, adjacency2, steps=STEPS)
    out_stream = jax.block_until_ready(
        hyperconv_forward(hidden2, adjacency2, steps=STEPS, force_streaming=True))
    assert out_stream.shape == (N2, D) and out_stream.dtype == jnp.float32
    assert jnp.allclose(out_stream, ref2, atol=5e-2, rtol=5e-2), "streaming path mismatch"

    print("KERNEL_OK")
</pallas_src>

<mosaic_0001>
module attributes {stable_mosaic.version = 11 : i64} {
  func.func @_hyper_fused_kernel(%arg0: memref<128x128xf32, #tpu.memory_space<vmem>>, %arg1: memref<128x128xf32, #tpu.memory_space<vmem>>, %arg2: memref<128x128xf32, #tpu.memory_space<vmem>>) attributes {dimension_semantics = [], scalar_prefetch = 0 : i64, scratch_operands = 0 : i64, tpu.core_type = #tpu.core_type<tc>} {
    %c0 = arith.constant 0 : index
    %c0_0 = arith.constant 0 : index
    %0 = vector.load %arg1[%c0, %c0_0] : memref<128x128xf32, #tpu.memory_space<vmem>>, vector<128x128xf32>
    %c0_1 = arith.constant 0 : index
    %c0_2 = arith.constant 0 : index
    %1 = vector.load %arg0[%c0_1, %c0_2] : memref<128x128xf32, #tpu.memory_space<vmem>>, vector<128x128xf32>
    %cst = arith.constant dense<0.000000e+00> : vector<128x128xf32>
    %2 = tpu.matmul %1, %0, %cst {dimension_numbers = #tpu.dot_dimension_numbers<[1], [0], [0], [1], [0, 0, 1, 1], [], []>} : vector<128x128xf32>, vector<128x128xf32>, vector<128x128xf32> -> vector<128x128xf32>
    %3 = arith.addf %0, %2 : vector<128x128xf32>
    %c0_3 = arith.constant 0 : index
    %c0_4 = arith.constant 0 : index
    %4 = vector.load %arg0[%c0_3, %c0_4] : memref<128x128xf32, #tpu.memory_space<vmem>>, vector<128x128xf32>
    %cst_5 = arith.constant dense<0.000000e+00> : vector<128x128xf32>
    %5 = tpu.matmul %4, %2, %cst_5 {dimension_numbers = #tpu.dot_dimension_numbers<[1], [0], [0], [1], [0, 0, 1, 1], [], []>} : vector<128x128xf32>, vector<128x128xf32>, vector<128x128xf32> -> vector<128x128xf32>
    %6 = arith.addf %3, %5 : vector<128x128xf32>
    %cst_6 = arith.constant 0.333333343 : f32
    %7 = vector.broadcast %cst_6 : f32 to vector<128x128xf32>
    %8 = arith.mulf %6, %7 : vector<128x128xf32>
    %c0_7 = arith.constant 0 : index
    %c0_8 = arith.constant 0 : index
    %9 = vector.load %arg2[%c0_7, %c0_8] : memref<128x128xf32, #tpu.memory_space<vmem>>, vector<128x128xf32>
    tpu.vector_store %arg2[%c0_7, %c0_8], %8 {strides = array<i32>} : memref<128x128xf32, #tpu.memory_space<vmem>>, vector<128x128xf32>,
    return
  }
}

</mosaic_0001>

<llo_original>
// kernel: hyperconv_forward.1
$region0: #{hyperconv_forward.1}
  #allocation0 [shape = 'u32[]', space=smem, size = 0x4, offset = 0x4, fixed_abs, tag = 'smem constant byte address 0x4 - core index']
  #allocation1 [shape = 'u32[144,128]{1,0:T(1,128)}', space=vmem, size = 0x12000, scoped, tag = 'internal scratch']
  %s0 = inlined_call_operand.vmem [shape: f32[128,128], index: 0, kind: input, shape index: {}]
  %s1 = inlined_call_operand.vmem [shape: f32[128,128], index: 1, kind: input, shape index: {}]
  %s2 = inlined_call_operand.vmem [shape: f32[128,128], index: 2, kind: output, shape index: {}]
  %s3 = sld [smem:[#allocation0]]
  $region18: #{hyperconv_forward.1} parent=0
    _
  %s5 = ssub.s32 1, %s3
  %s6 = scalar_select 0, %s5, %s3
  // Predicated region
  $region2: #{hyperconv_forward.1} parent=0 // pred_check
    _
  $region3: #{hyperconv_forward.1} parent=0 // pred_check_branch
    %8 = sbr.rel (0) target = $region5
  $region4: #{hyperconv_forward.1} parent=0 // pred_region
    _
  $region5: #{hyperconv_forward.1} parent=0 // pred_fallthru
    _
  // Predicated region
  $region6: #{hyperconv_forward.1} parent=0 // pred_check
    _
  $region7: #{hyperconv_forward.1} parent=0 // pred_check_branch
    %10 = sbr.rel (0) target = $region9
  $region8: #{hyperconv_forward.1} parent=0 // pred_region
    _
  $region9: #{hyperconv_forward.1} parent=0 // pred_fallthru
    _
  %v11 = vld [vmem:[%s1] sm:$0xff]
  %v12 = vld [vmem:[%s1 + $0x8] sm:$0xff]
  %v13 = vld [vmem:[%s1 + $0x10] sm:$0xff]
  %v14 = vld [vmem:[%s1 + $0x18] sm:$0xff]
  %v15 = vld [vmem:[%s1 + $0x20] sm:$0xff]
  %v16 = vld [vmem:[%s1 + $0x28] sm:$0xff]
  %v17 = vld [vmem:[%s1 + $0x30] sm:$0xff]
  %v18 = vld [vmem:[%s1 + $0x38] sm:$0xff]
  %v19 = vld [vmem:[%s1 + $0x40] sm:$0xff]
  %v20 = vld [vmem:[%s1 + $0x48] sm:$0xff]
  %v21 = vld [vmem:[%s1 + $0x50] sm:$0xff]
  %v22 = vld [vmem:[%s1 + $0x58] sm:$0xff]
  %v23 = vld [vmem:[%s1 + $0x60] sm:$0xff]
  %v24 = vld [vmem:[%s1 + $0x68] sm:$0xff]
  %v25 = vld [vmem:[%s1 + $0x70] sm:$0xff]
  %v26 = vld [vmem:[%s1 + $0x78] sm:$0xff]
  %v27 = vld [vmem:[%s0] sm:$0xff]
  %v28 = vld [vmem:[%s0 + $0x8] sm:$0xff]
  %v29 = vld [vmem:[%s0 + $0x10] sm:$0xff]
  %v30 = vld [vmem:[%s0 + $0x18] sm:$0xff]
  %v31 = vld [vmem:[%s0 + $0x20] sm:$0xff]
  %v32 = vld [vmem:[%s0 + $0x28] sm:$0xff]
  %v33 = vld [vmem:[%s0 + $0x30] sm:$0xff]
  %v34 = vld [vmem:[%s0 + $0x38] sm:$0xff]
  %v35 = vld [vmem:[%s0 + $0x40] sm:$0xff]
  %v36 = vld [vmem:[%s0 + $0x48] sm:$0xff]
  %v37 = vld [vmem:[%s0 + $0x50] sm:$0xff]
  %v38 = vld [vmem:[%s0 + $0x58] sm:$0xff]
  %v39 = vld [vmem:[%s0 + $0x60] sm:$0xff]
  %v40 = vld [vmem:[%s0 + $0x68] sm:$0xff]
  %v41 = vld [vmem:[%s0 + $0x70] sm:$0xff]
  %v42 = vld [vmem:[%s0 + $0x78] sm:$0xff]
  %43 = vmatprep.subr.mxu0 0.0
  %44 = vmatpush1.msra.mxu0 %v11
  %45 = vmatprep.subr.mxu0 0.0
  %46 = vmatpush1.msra.mxu0 %v12
  %47 = vmatprep.subr.mxu0 0.0
  %48 = vmatpush1.msra.mxu0 %v13
  %49 = vmatprep.subr.mxu0 0.0
  %50 = vmatpush1.msra.mxu0 %v14
  %51 = vmatprep.subr.mxu0 0.0
  %52 = vmatpush1.msra.mxu0 %v15
  %53 = vmatprep.subr.mxu0 0.0
  %54 = vmatpush1.msra.mxu0 %v16
  %55 = vmatprep.subr.mxu0 0.0
  %56 = vmatpush1.msra.mxu0 %v17
  %57 = vmatprep.subr.mxu0 0.0
  %58 = vmatpush1.msra.mxu0 %v18
  %59 = vmatprep.subr.mxu0 0.0
  %60 = vmatpush1.msra.mxu0 %v19
  %61 = vmatprep.subr.mxu0 0.0
  %62 = vmatpush1.msra.mxu0 %v20
  %63 = vmatprep.subr.mxu0 0.0
  %64 = vmatpush1.msra.mxu0 %v21
  %65 = vmatprep.subr.mxu0 0.0
  %66 = vmatpush1.msra.mxu0 %v22
  %67 = vmatprep.subr.mxu0 0.0
  %68 = vmatpush1.msra.mxu0 %v23
  %69 = vmatprep.subr.mxu0 0.0
  %70 = vmatpush1.msra.mxu0 %v24
  %71 = vmatprep.subr.mxu0 0.0
  %72 = vmatpush1.msra.mxu0 %v25
  %73 = vmatprep.subr.mxu0 0.0
  %74 = vmatpush1.msra.mxu0 %v26
  %75 = vmatprep.subr.mxu0 0.0
  %76 = vmatpush1.msra.mxu0 0.0
  %77 = vmatprep.subr.mxu0 0.0
  %78 = vmatpush1.msra.mxu0 0.0
  %79 = vmatprep.subr.mxu0 0.0
  %80 = vmatpush1.msra.mxu0 0.0
  %81 = vmatprep.subr.mxu0 0.0
  %82 = vmatpush1.msra.mxu0 0.0
  %83 = vmatprep.subr.mxu0 0.0
  %84 = vmatpush1.msra.mxu0 0.0
  %85 = vmatprep.subr.mxu0 0.0
  %86 = vmatpush1.msra.mxu0 0.0
  %87 = vmatprep.subr.mxu0 0.0
  %88 = vmatpush1.msra.mxu0 0.0
  %89 = vmatprep.subr.mxu0 0.0
  %90 = vmatpush1.msra.mxu0 0.0
  %91 = vmatprep.subr.mxu0 0.0
  %92 = vmatpush1.msra.mxu0 0.0
  %93 = vmatprep.subr.mxu0 0.0
  %94 = vmatpush1.msra.mxu0 0.0
  %95 = vmatprep.subr.mxu0 0.0
  %96 = vmatpush1.msra.mxu0 0.0
  %97 = vmatprep.subr.mxu0 0.0
  %98 = vmatpush1.msra.mxu0 0.0
  %99 = vmatprep.subr.mxu0 0.0
  %100 = vmatpush1.msra.mxu0 0.0
  %101 = vmatprep.subr.mxu0 0.0
  %102 = vmatpush1.msra.mxu0 0.0
  %103 = vmatprep.subr.mxu0 0.0
  %104 = vmatpush1.msra.mxu0 0.0
  %105 = vmatprep.subr.mxu0 0.0
  %106 = vmatpush1.msra.mxu0 0.0
  %107 = vmatprep.mubr.f32.mxu0 0.0
  %108 = vmatmul.mubr.f32.gmra.mrb[0].mxu0 %v27
  %v109 = vpop.f32.mrb[0].mxu0
  %v110 = vadd.f32 0.0, %v109
  %v111 = vpop.f32.mrb[0].mxu0
  %112 = vmatprep.mubr.f32.mxu0 0.0
  %113 = vmatmul.mubr.f32.gmra.mrb[0].mxu0 %v28
  %v114 = vpop.f32.mrb[0].mxu0
  %v115 = vadd.f32 0.0, %v114
  %v116 = vpop.f32.mrb[0].mxu0
  %117 = vmatprep.mubr.f32.mxu0 0.0
  %118 = vmatmul.mubr.f32.gmra.mrb[0].mxu0 %v29
  %v119 = vpop.f32.mrb[0].mxu0
  %v120 = vadd.f32 0.0, %v119
  %v121 = vpop.f32.mrb[0].mxu0
  %122 = vmatprep.mubr.f32.mxu0 0.0
  %123 = vmatmul.mubr.f32.gmra.mrb[0].mxu0 %v30
  %v124 = vpop.f32.mrb[0].mxu0
  %v125 = vadd.f32 0.0, %v124
  %v126 = vpop.f32.mrb[0].mxu0
  %127 = vmatprep.mubr.f32.mxu0 0.0
  %128 = vmatmul.mubr.f32.gmra.mrb[0].mxu0 %v31
  %v129 = vpop.f32.mrb[0].mxu0
  %v130 = vadd.f32 0.0, %v129
  %v131 = vpop.f32.mrb[0].mxu0
  %132 = vmatprep.mubr.f32.mxu0 0.0
  %133 = vmatmul.mubr.f32.gmra.mrb[0].mxu0 %v32
  %v134 = vpop.f32.mrb[0].mxu0
  %v135 = vadd.f32 0.0, %v134
  %v136 = vpop.f32.mrb[0].mxu0
  %137 = vmatprep.mubr.f32.mxu0 0.0
  %138 = vmatmul.mubr.f32.gmra.mrb[0].mxu0 %v33
  %v139 = vpop.f32.mrb[0].mxu0
  %v140 = vadd.f32 0.0, %v139
  %v141 = vpop.f32.mrb[0].mxu0
  %142 = vmatprep.mubr.f32.mxu0 0.0
  %143 = vmatmul.mubr.f32.gmra.mrb[0].mxu0 %v34
  %v144 = vpop.f32.mrb[0].mxu0
  %v145 = vadd.f32 0.0, %v144
  %v146 = vpop.f32.mrb[0].mxu0
  %147 = vmatprep.mubr.f32.mxu0 0.0
  %148 = vmatmul.mubr.f32.gmra.mrb[0].mxu0 %v35
  %v149 = vpop.f32.mrb[0].mxu0
  %v150 = vadd.f32 0.0, %v149
  %v151 = vpop.f32.mrb[0].mxu0
  %152 = vmatprep.mubr.f32.mxu0 0.0
  %153 = vmatmul.mubr.f32.gmra.mrb[0].mxu0 %v36
  %v154 = vpop.f32.mrb[0].mxu0
  %v155 = vadd.f32 0.0, %v154
  %v156 = vpop.f32.mrb[0].mxu0
  %157 = vmatprep.mubr.f32.mxu0 0.0
  %158 = vmatmul.mubr.f32.gmra.mrb[0].mxu0 %v37
  %v159 = vpop.f32.mrb[0].mxu0
  %v160 = vadd.f32 0.0, %v159
  %v161 = vpop.f32.mrb[0].mxu0
  %162 = vmatprep.mubr.f32.mxu0 0.0
  %163 = vmatmul.mubr.f32.gmra.mrb[0].mxu0 %v38
  %v164 = vpop.f32.mrb[0].mxu0
  %v165 = vadd.f32 0.0, %v164
  %v166 = vpop.f32.mrb[0].mxu0
  %167 = vmatprep.mubr.f32.mxu0 0.0
  %168 = vmatmul.mubr.f32.gmra.mrb[0].mxu0 %v39
  %v169 = vpop.f32.mrb[0].mxu0
  %v170 = vadd.f32 0.0, %v169
  %v171 = vpop.f32.mrb[0].mxu0
  %172 = vmatprep.mubr.f32.mxu0 0.0
  %173 = vmatmul.mubr.f32.gmra.mrb[0].mxu0 %v40
  %v174 = vpop.f32.mrb[0].mxu0
  %v175 = vadd.f32 0.0, %v174
  %v176 = vpop.f32.mrb[0].mxu0
  %177 = vmatprep.mubr.f32.mxu0 0.0
  %178 = vmatmul.mubr.f32.gmra.mrb[0].mxu0 %v41
  %v179 = vpop.f32.mrb[0].mxu0
  %v180 = vadd.f32 0.0, %v179
  %v181 = vpop.f32.mrb[0].mxu0
  %182 = vmatprep.mubr.f32.mxu0 0.0
  %183 = vmatmul.mubr.f32.gmra.mrb[0].mxu0 %v42
  %v184 = vpop.f32.mrb[0].mxu0
  %v185 = vadd.f32 0.0, %v184
  %v186 = vpop.f32.mrb[0].mxu0
  %187 = vdwg.mxu0
  %v188 = vadd.f32 %v11, %v110
  %v189 = vadd.f32 %v12, %v115
  %v190 = vadd.f32 %v13, %v120
  %v191 = vadd.f32 %v14, %v125
  %v192 = vadd.f32 %v15, %v130
  %v193 = vadd.f32 %v16, %v135
  %v194 = vadd.f32 %v17, %v140
  %v195 = vadd.f32 %v18, %v145
  %v196 = vadd.f32 %v19, %v150
  %v197 = vadd.f32 %v20, %v155
  %v198 = vadd.f32 %v21, %v160
  %v199 = vadd.f32 %v22, %v165
  %v200 = vadd.f32 %v23, %v170
  %v201 = vadd.f32 %v24, %v175
  %v202 = vadd.f32 %v25, %v180
  %v203 = vadd.f32 %v26, %v185
  %204 = vmatprep.subr.mxu0 0.0
  %205 = vmatpush1.msra.mxu0 %v110
  %206 = vmatprep.subr.mxu0 0.0
  %207 = vmatpush1.msra.mxu0 %v115
  %208 = vmatprep.subr.mxu0 0.0
  %209 = vmatpush1.msra.mxu0 %v120
  %210 = vmatprep.subr.mxu0 0.0
  %211 = vmatpush1.msra.mxu0 %v125
  %212 = vmatprep.subr.mxu0 0.0
  %213 = vmatpush1.msra.mxu0 %v130
  %214 = vmatprep.subr.mxu0 0.0
  %215 = vmatpush1.msra.mxu0 %v135
  %216 = vmatprep.subr.mxu0 0.0
  %217 = vmatpush1.msra.mxu0 %v140
  %218 = vmatprep.subr.mxu0 0.0
  %219 = vmatpush1.msra.mxu0 %v145
  %220 = vmatprep.subr.mxu0 0.0
  %221 = vmatpush1.msra.mxu0 %v150
  %222 = vmatprep.subr.mxu0 0.0
  %223 = vmatpush1.msra.mxu0 %v155
  %224 = vmatprep.subr.mxu0 0.0
  %225 = vmatpush1.msra.mxu0 %v160
  %226 = vmatprep.subr.mxu0 0.0
  %227 = vmatpush1.msra.mxu0 %v165
  %228 = vmatprep.subr.mxu0 0.0
  %229 = vmatpush1.msra.mxu0 %v170
  %230 = vmatprep.subr.mxu0 0.0
  %231 = vmatpush1.msra.mxu0 %v175
  %232 = vmatprep.subr.mxu0 0.0
  %233 = vmatpush1.msra.mxu0 %v180
  %234 = vmatprep.subr.mxu0 0.0
  %235 = vmatpush1.msra.mxu0 %v185
  %236 = vmatprep.subr.mxu0 0.0
  %237 = vmatpush1.msra.mxu0 0.0
  %238 = vmatprep.subr.mxu0 0.0
  %239 = vmatpush1.msra.mxu0 0.0
  %240 = vmatprep.subr.mxu0 0.0
  %241 = vmatpush1.msra.mxu0 0.0
  %242 = vmatprep.subr.mxu0 0.0
  %243 = vmatpush1.msra.mxu0 0.0
  %244 = vmatprep.subr.mxu0 0.0
  %245 = vmatpush1.msra.mxu0 0.0
  %246 = vmatprep.subr.mxu0 0.0
  %247 = vmatpush1.msra.mxu0 0.0
  %248 = vmatprep.subr.mxu0 0.0
  %249 = vmatpush1.msra.mxu0 0.0
  %250 = vmatprep.subr.mxu0 0.0
  %251 = vmatpush1.msra.mxu0 0.0
  %252 = vmatprep.subr.mxu0 0.0
  %253 = vmatpush1.msra.mxu0 0.0
  %254 = vmatprep.subr.mxu0 0.0
  %255 = vmatpush1.msra.mxu0 0.0
  %256 = vmatprep.subr.mxu0 0.0
  %257 = vmatpush1.msra.mxu0 0.0
  %258 = vmatprep.subr.mxu0 0.0
  %259 = vmatpush1.msra.mxu0 0.0
  %260 = vmatprep.subr.mxu0 0.0
  %261 = vmatpush1.msra.mxu0 0.0
  %262 = vmatprep.subr.mxu0 0.0
  %263 = vmatpush1.msra.mxu0 0.0
  %264 = vmatprep.subr.mxu0 0.0
  %265 = vmatpush1.msra.mxu0 0.0
  %266 = vmatprep.subr.mxu0 0.0
  %267 = vmatpush1.msra.mxu0 0.0
  %268 = vmatprep.mubr.f32.mxu0 0.0
  %269 = vmatmul.mubr.f32.gmra.mrb[0].mxu0 %v27
  %v270 = vpop.f32.mrb[0].mxu0
  %v271 = vadd.f32 0.0, %v270
  %v272 = vpop.f32.mrb[0].mxu0
  %273 = vmatprep.mubr.f32.mxu0 0.0
  %274 = vmatmul.mubr.f32.gmra.mrb[0].mxu0 %v28
  %v275 = vpop.f32.mrb[0].mxu0
  %v276 = vadd.f32 0.0, %v275
  %v277 = vpop.f32.mrb[0].mxu0
  %278 = vmatprep.mubr.f32.mxu0 0.0
  %279 = vmatmul.mubr.f32.gmra.mrb[0].mxu0 %v29
  %v280 = vpop.f32.mrb[0].mxu0
  %v281 = vadd.f32 0.0, %v280
  %v282 = vpop.f32.mrb[0].mxu0
  %283 = vmatprep.mubr.f32.mxu0 0.0
  %284 = vmatmul.mubr.f32.gmra.mrb[0].mxu0 %v30
  %v285 = vpop.f32.mrb[0].mxu0
  %v286 = vadd.f32 0.0, %v285
  %v287 = vpop.f32.mrb[0].mxu0
  %288 = vmatprep.mubr.f32.mxu0 0.0
  %289 = vmatmul.mubr.f32.gmra.mrb[0].mxu0 %v31
  %v290 = vpop.f32.mrb[0].mxu0
  %v291 = vadd.f32 0.0, %v290
  %v292 = vpop.f32.mrb[0].mxu0
  %293 = vmatprep.mubr.f32.mxu0 0.0
  %294 = vmatmul.mubr.f32.gmra.mrb[0].mxu0 %v32
  %v295 = vpop.f32.mrb[0].mxu0
  %v296 = vadd.f32 0.0, %v295
  %v297 = vpop.f32.mrb[0].mxu0
  %298 = vmatprep.mubr.f32.mxu0 0.0
  %299 = vmatmul.mubr.f32.gmra.mrb[0].mxu0 %v33
  %v300 = vpop.f32.mrb[0].mxu0
  %v301 = vadd.f32 0.0, %v300
  %v302 = vpop.f32.mrb[0].mxu0
  %303 = vmatprep.mubr.f32.mxu0 0.0
  %304 = vmatmul.mubr.f32.gmra.mrb[0].mxu0 %v34
  %v305 = vpop.f32.mrb[0].mxu0
  %v306 = vadd.f32 0.0, %v305
  %v307 = vpop.f32.mrb[0].mxu0
  %308 = vmatprep.mubr.f32.mxu0 0.0
  %309 = vmatmul.mubr.f32.gmra.mrb[0].mxu0 %v35
  %v310 = vpop.f32.mrb[0].mxu0
  %v311 = vadd.f32 0.0, %v310
  %v312 = vpop.f32.mrb[0].mxu0
  %313 = vmatprep.mubr.f32.mxu0 0.0
  %314 = vmatmul.mubr.f32.gmra.mrb[0].mxu0 %v36
  %v315 = vpop.f32.mrb[0].mxu0
  %v316 = vadd.f32 0.0, %v315
  %v317 = vpop.f32.mrb[0].mxu0
  %318 = vmatprep.mubr.f32.mxu0 0.0
  %319 = vmatmul.mubr.f32.gmra.mrb[0].mxu0 %v37
  %v320 = vpop.f32.mrb[0].mxu0
  %v321 = vadd.f32 0.0, %v320
  %v322 = vpop.f32.mrb[0].mxu0
  %323 = vmatprep.mubr.f32.mxu0 0.0
  %324 = vmatmul.mubr.f32.gmra.mrb[0].mxu0 %v38
  %v325 = vpop.f32.mrb[0].mxu0
  %v326 = vadd.f32 0.0, %v325
  %v327 = vpop.f32.mrb[0].mxu0
  %328 = vmatprep.mubr.f32.mxu0 0.0
  %329 = vmatmul.mubr.f32.gmra.mrb[0].mxu0 %v39
  %v330 = vpop.f32.mrb[0].mxu0
  %v331 = vadd.f32 0.0, %v330
  %v332 = vpop.f32.mrb[0].mxu0
  %333 = vmatprep.mubr.f32.mxu0 0.0
  %334 = vmatmul.mubr.f32.gmra.mrb[0].mxu0 %v40
  %v335 = vpop.f32.mrb[0].mxu0
  %v336 = vadd.f32 0.0, %v335
  %v337 = vpop.f32.mrb[0].mxu0
  %338 = vmatprep.mubr.f32.mxu0 0.0
  %339 = vmatmul.mubr.f32.gmra.mrb[0].mxu0 %v41
  %v340 = vpop.f32.mrb[0].mxu0
  %v341 = vadd.f32 0.0, %v340
  %v342 = vpop.f32.mrb[0].mxu0
  %343 = vmatprep.mubr.f32.mxu0 0.0
  %344 = vmatmul.mubr.f32.gmra.mrb[0].mxu0 %v42
  %v345 = vpop.f32.mrb[0].mxu0
  %v346 = vadd.f32 0.0, %v345
  %v347 = vpop.f32.mrb[0].mxu0
  %348 = vdwg.mxu0
  %v349 = vadd.f32 %v188, %v271
  %v350 = vadd.f32 %v189, %v276
  %v351 = vadd.f32 %v190, %v281
  %v352 = vadd.f32 %v191, %v286
  %v353 = vadd.f32 %v192, %v291
  %v354 = vadd.f32 %v193, %v296
  %v355 = vadd.f32 %v194, %v301
  %v356 = vadd.f32 %v195, %v306
  %v357 = vadd.f32 %v196, %v311
  %v358 = vadd.f32 %v197, %v316
  %v359 = vadd.f32 %v198, %v321
  %v360 = vadd.f32 %v199, %v326
  %v361 = vadd.f32 %v200, %v331
  %v362 = vadd.f32 %v201, %v336
  %v363 = vadd.f32 %v202, %v341
  %v364 = vadd.f32 %v203, %v346
  %v365 = vmul.f32 %v349, 0.33333334
  %v366 = vmul.f32 %v350, 0.33333334
  %v367 = vmul.f32 %v351, 0.33333334
  %v368 = vmul.f32 %v352, 0.33333334
  %v369 = vmul.f32 %v353, 0.33333334
  %v370 = vmul.f32 %v354, 0.33333334
  %v371 = vmul.f32 %v355, 0.33333334
  %v372 = vmul.f32 %v356, 0.33333334
  %v373 = vmul.f32 %v357, 0.33333334
  %v374 = vmul.f32 %v358, 0.33333334
  %v375 = vmul.f32 %v359, 0.33333334
  %v376 = vmul.f32 %v360, 0.33333334
  %v377 = vmul.f32 %v361, 0.33333334
  %v378 = vmul.f32 %v362, 0.33333334
  %v379 = vmul.f32 %v363, 0.33333334
  %v380 = vmul.f32 %v364, 0.33333334
  %381 = vst [vmem:[%s2] sm:$0xff] %v365
  %382 = vst [vmem:[%s2 + $0x8] sm:$0xff] %v366
  %383 = vst [vmem:[%s2 + $0x10] sm:$0xff] %v367
  %384 = vst [vmem:[%s2 + $0x18] sm:$0xff] %v368
  %385 = vst [vmem:[%s2 + $0x20] sm:$0xff] %v369
  %386 = vst [vmem:[%s2 + $0x28] sm:$0xff] %v370
  %387 = vst [vmem:[%s2 + $0x30] sm:$0xff] %v371
  %388 = vst [vmem:[%s2 + $0x38] sm:$0xff] %v372
  %389 = vst [vmem:[%s2 + $0x40] sm:$0xff] %v373
  %390 = vst [vmem:[%s2 + $0x48] sm:$0xff] %v374
  %391 = vst [vmem:[%s2 + $0x50] sm:$0xff] %v375
  %392 = vst [vmem:[%s2 + $0x58] sm:$0xff] %v376
  %393 = vst [vmem:[%s2 + $0x60] sm:$0xff] %v377
  %394 = vst [vmem:[%s2 + $0x68] sm:$0xff] %v378
  %395 = vst [vmem:[%s2 + $0x70] sm:$0xff] %v379
  %396 = vst [vmem:[%s2 + $0x78] sm:$0xff] %v380
  // Predicated region
  $region10: #{hyperconv_forward.1} parent=0 // pred_check
    _
  $region11: #{hyperconv_forward.1} parent=0 // pred_check_branch
    %398 = sbr.rel (0) target = $region13
  $region12: #{hyperconv_forward.1} parent=0 // pred_region
    _
  $region13: #{hyperconv_forward.1} parent=0 // pred_fallthru
    _
  // Predicated region
  $region14: #{hyperconv_forward.1} parent=0 // pred_check
    _
  $region15: #{hyperconv_forward.1} parent=0 // pred_check_branch
    %400 = sbr.rel (0) target = $region17
  $region16: #{hyperconv_forward.1} parent=0 // pred_region
    _
  $region17: #{hyperconv_forward.1} parent=0 // pred_fallthru
    _

</llo_original>
